<compile_context>
chip_gen: v7x
topology: tpu7x:2x2x1
jax: 0.10.0
libtpu: 0.0.40
codegen_flags: <defaults>
</compile_context>

<pallas_src>
import functools

import numpy as np
import jax
import jax.numpy as jnp
from jax.experimental import pallas as pl
from jax.experimental.pallas import tpu as pltpu


# ----------------------------------------------------------------------------
# Constants / parameter construction (glue, plain numpy / JAX)
# ----------------------------------------------------------------------------
_QT_Y = np.array(
    [[16, 11, 10, 16, 24, 40, 51, 61],
     [12, 12, 14, 19, 26, 58, 60, 55],
     [14, 13, 16, 24, 40, 57, 69, 56],
     [14, 17, 22, 29, 51, 87, 80, 62],
     [18, 22, 37, 56, 68, 109, 103, 77],
     [24, 35, 55, 64, 81, 104, 113, 92],
     [49, 64, 78, 87, 103, 121, 120, 101],
     [72, 92, 95, 98, 112, 100, 103, 99]], dtype=np.float64)

_QT_C = np.array(
    [[17, 18, 24, 47, 99, 99, 99, 99],
     [18, 21, 26, 66, 99, 99, 99, 99],
     [24, 26, 56, 99, 99, 99, 99, 99],
     [47, 66, 99, 99, 99, 99, 99, 99],
     [99, 99, 99, 99, 99, 99, 99, 99],
     [99, 99, 99, 99, 99, 99, 99, 99],
     [99, 99, 99, 99, 99, 99, 99, 99],
     [99, 99, 99, 99, 99, 99, 99, 99]], dtype=np.float64)


def _dct_matrix(n=8):
    """Orthonormal DCT-II matrix, matching torch_dct.dct(..., norm='ortho')."""
    k = np.arange(n)[:, None].astype(np.float64)
    i = np.arange(n)[None, :].astype(np.float64)
    d = np.cos(np.pi * (2.0 * i + 1.0) * k / (2.0 * n))
    d[0, :] *= np.sqrt(1.0 / n)
    d[1:, :] *= np.sqrt(2.0 / n)
    return d


def make_perceptual_weights(key):
    """Replicates FDPLLoss.__init__ with a deterministic synthetic diff_means.

    TODO(synk): the original loads pre-computed diff_means from a .pt file
                (dataset_diff_means_file); we synthesize it in-script.
    """
    diff_means = jax.random.uniform(key, (3, 8, 8), dtype=jnp.float32,
                                    minval=0.5, maxval=1.5)
    inv_qt = np.stack([1.0 / _QT_Y, 1.0 / _QT_C, 1.0 / _QT_C]).astype(np.float32)
    pw = jnp.asarray(inv_qt) * diff_means
    pw = pw / jnp.mean(pw)
    return pw  # (3, 8, 8)


@functools.lru_cache(maxsize=None)
def _dct_operands(th, tw):
    """Tile-local block-diagonal DCT matrices (cached, bf16 MXU operands)."""
    d8 = _dct_matrix(8)
    dh = np.kron(np.eye(th // 8), d8).astype(np.float32)        # (TH, TH)
    dwt = np.kron(np.eye(tw // 8), d8.T).astype(np.float32)     # (TW, TW)
    return (jnp.asarray(dh, dtype=jnp.bfloat16),
            jnp.asarray(dwt, dtype=jnp.bfloat16))


def _pick_tile(dim, pref, align):
    """Largest tile <= pref that divides `dim` and is a multiple of `align`
    (falls back to the full dim)."""
    if dim <= pref:
        return dim
    t = (pref // align) * align
    while t >= align:
        if dim % t == 0:
            return t
        t -= align
    return dim


# ----------------------------------------------------------------------------
# Pallas kernel: one (3, TH, TW) tile of one batch element per grid step.
# ----------------------------------------------------------------------------
def fdpl_kernel(pred_ref, tgt_ref, w_ref, dh_ref, dwt_ref, out_ref):
    # pred_ref / tgt_ref : (3, TH, TW) f32   (batch dim squeezed away)
    # w_ref              : (3, TH, TW) f32   tiled perceptual weights
    # dh_ref             : (TH, TH) bf16     block-diag kron(I, D8)
    # dwt_ref            : (TW, TW) bf16     block-diag kron(I, D8^T)
    # out_ref            : (R, C)  f32       lane-dense per-step partial sums
    d = pred_ref[...] - tgt_ref[...]              # diff-first (linearity)
    dr, dg, db = d[0], d[1], d[2]

    # RGB->YCbCr is affine; the +16/+128 offsets cancel in the difference.
    d_y = 65.481 * dr + 128.553 * dg + 24.966 * db
    d_cb = -37.797 * dr - 74.203 * dg + 112.000 * db
    d_cr = 112.000 * dr - 93.786 * dg - 18.214 * db
    dch = (d_y, d_cb, d_cr)

    dh = dh_ref[...]                              # bf16
    dwt = dwt_ref[...]                            # bf16

    th, tw = d_y.shape
    wsq = jnp.zeros((th, tw), jnp.float32)
    for c in range(3):                            # static 3-channel unroll
        x = dch[c].astype(jnp.bfloat16)
        t = jnp.dot(x, dwt, preferred_element_type=jnp.float32)     # col DCT
        coef = jnp.dot(dh, t.astype(jnp.bfloat16),
                       preferred_element_type=jnp.float32)          # row DCT
        wsq = wsq + coef * coef * w_ref[c]

    # Fold (TH, TW) -> (R, C) with vreg-aligned static slices: pure VPU adds,
    # no per-step cross-lane reduction, lane-dense output store.
    r, c = out_ref.shape
    acc = jnp.zeros((r, c), jnp.float32)
    for i in range(th // r):
        for j in range(tw // c):
            acc = acc + wsq[i * r:(i + 1) * r, j * c:(j + 1) * c]
    out_ref[...] = acc


def fdpl_loss_pallas(predictions, targets, perceptual_weights,
                     *, th_pref=256, tw_pref=256):
    """FDPL loss.  predictions/targets: (B, 3, H, W); weights: (3, 8, 8)."""
    B, C, H, W = predictions.shape
    assert C == 3 and H % 8 == 0 and W % 8 == 0

    # Tile sizes: TH multiple of 8, TW either full W or a multiple of 128
    # (BlockSpec (8,128) divisibility).  Square-ish 256x256 defaults minimise
    # block-diagonal matmul waste per streamed byte (intensity ~(TH+TW)/4 =
    # 128 flops/byte -> memory-bound on v5e/v6e/v7x), stream ~1.6 MB/step
    # (amortises the ~0.35 us/step grid overhead) and keep per-step VMEM
    # ~5-6 MiB, inside the default scoped VMEM everywhere.
    TH = _pick_tile(H, th_pref, 8)
    TW = _pick_tile(W, tw_pref, 128)
    n_th, n_tw = H // TH, W // TW
    R = 8 if TH % 8 == 0 else TH          # TH is always a multiple of 8
    CL = 128 if TW % 128 == 0 else TW     # lane-dense partial width

    dh, dwt = _dct_operands(TH, TW)
    # Only a tile-sized weight image (period-8 pattern, identical per tile).
    w_tile = jnp.tile(perceptual_weights.astype(jnp.float32),
                      (1, TH // 8, TW // 8))                    # (3, TH, TW)

    partials = pl.pallas_call(
        fdpl_kernel,
        out_shape=jax.ShapeDtypeStruct((B, n_th, n_tw, R, CL), jnp.float32),
        grid_spec=pltpu.PrefetchScalarGridSpec(
            num_scalar_prefetch=0,
            grid=(B, n_th, n_tw),
            in_specs=[
                pl.BlockSpec((pl.Squeezed(), 3, TH, TW),
                             lambda b, i, j: (b, 0, i, j)),      # predictions
                pl.BlockSpec((pl.Squeezed(), 3, TH, TW),
                             lambda b, i, j: (b, 0, i, j)),      # targets
                pl.BlockSpec((3, TH, TW), lambda b, i, j: (0, 0, 0)),  # weights
                pl.BlockSpec((TH, TH), lambda b, i, j: (0, 0)),        # Dh
                pl.BlockSpec((TW, TW), lambda b, i, j: (0, 0)),        # Dw^T
            ],
            out_specs=pl.BlockSpec(
                (pl.Squeezed(), pl.Squeezed(), pl.Squeezed(), R, CL),
                lambda b, i, j: (b, i, j, 0, 0)),
        ),
        compiler_params=pltpu.CompilerParams(
            # Every grid step writes its own output block (no carried state),
            # so all axes can be parallel -> v7x dual-TensorCore sharding.
            dimension_semantics=("parallel", "parallel", "parallel")),
    )(predictions.astype(jnp.float32), targets.astype(jnp.float32),
      w_tile, dh, dwt)

    return jnp.sum(partials)


# ----------------------------------------------------------------------------
# Pure-JAX reference (for correctness checking only)
# ----------------------------------------------------------------------------
def fdpl_loss_ref(predictions, targets, perceptual_weights):
    def rgb2ycbcr(x):
        r, g, b = x[:, 0], x[:, 1], x[:, 2]
        y = 65.481 * r + 128.553 * g + 24.966 * b + 16.0
        cb = -37.797 * r - 74.203 * g + 112.0 * b + 128.0
        cr = 112.0 * r - 93.786 * g - 18.214 * b + 128.0
        return jnp.stack([y, cb, cr], axis=1)

    p = rgb2ycbcr(predictions.astype(jnp.float32))
    t = rgb2ycbcr(targets.astype(jnp.float32))
    B, C, H, W = p.shape
    d = jnp.asarray(_dct_matrix(8).astype(np.float32))

    def patches(x):
        x = x.reshape(B, C, H // 8, 8, W // 8, 8)
        x = x.transpose(0, 2, 4, 1, 3, 5)          # (B, H/8, W/8, C, 8, 8)
        return x.reshape(B, -1, C, 8, 8)

    def dct2(x):
        return jnp.einsum('ij,...jk,lk->...il', d, x, d,
                          precision=jax.lax.Precision.HIGHEST)

    pd = dct2(patches(p))
    td = dct2(patches(t))
    return jnp.sum((pd - td) ** 2 * perceptual_weights.astype(jnp.float32))


# ----------------------------------------------------------------------------
if __name__ == "__main__":
    key = jax.random.PRNGKey(0)
    k1, k2, k3 = jax.random.split(key, 3)

    B, H, W = 2, 16, 16
    preds = jax.random.uniform(k1, (B, 3, H, W), dtype=jnp.float32)
    tgts = jax.random.uniform(k2, (B, 3, H, W), dtype=jnp.float32)
    pw = make_perceptual_weights(k3)

    loss = fdpl_loss_pallas(preds, tgts, pw)
    loss = jax.block_until_ready(loss)

    ref = fdpl_loss_ref(preds, tgts, pw)
    assert bool(jnp.isfinite(loss))
    np.testing.assert_allclose(np.asarray(loss), np.asarray(ref),
                               rtol=2e-2, atol=1e-2)
    print("KERNEL_OK")
</pallas_src>

<mosaic_0001>
module attributes {stable_mosaic.version = 11 : i64} {
  func.func @fdpl_kernel(%arg0: i32, %arg1: i32, %arg2: i32, %arg3: memref<1x3x16x16xf32, #tpu.memory_space<vmem>>, %arg4: memref<1x3x16x16xf32, #tpu.memory_space<vmem>>, %arg5: memref<3x16x16xf32, #tpu.memory_space<vmem>>, %arg6: memref<16x16xbf16, #tpu.memory_space<vmem>>, %arg7: memref<16x16xbf16, #tpu.memory_space<vmem>>, %arg8: memref<1x1x1x8x16xf32, #tpu.memory_space<vmem>>) attributes {dimension_semantics = [#tpu.dimension_semantics<parallel>, #tpu.dimension_semantics<parallel>, #tpu.dimension_semantics<parallel>], iteration_bounds = array<i64: 2, 1, 1>, scalar_prefetch = 0 : i64, scratch_operands = 0 : i64, tpu.core_type = #tpu.core_type<tc>, window_params = [{transform_indices = @transform_0, window_bounds = array<i64: 1, 3, 16, 16>}, {transform_indices = @transform_1, window_bounds = array<i64: 1, 3, 16, 16>}, {pipeline_mode = #tpu.pipeline_mode<synchronous>, transform_indices = @transform_2, window_bounds = array<i64: 3, 16, 16>}, {pipeline_mode = #tpu.pipeline_mode<synchronous>, transform_indices = @transform_3, window_bounds = array<i64: 16, 16>}, {pipeline_mode = #tpu.pipeline_mode<synchronous>, transform_indices = @transform_4, window_bounds = array<i64: 16, 16>}, {transform_indices = @transform_5, window_bounds = array<i64: 1, 1, 1, 8, 16>}]} {
    %c0 = arith.constant 0 : index
    %c0_0 = arith.constant 0 : index
    %c0_1 = arith.constant 0 : index
    %c0_2 = arith.constant 0 : index
    %0 = vector.load %arg3[%c0, %c0_0, %c0_1, %c0_2] : memref<1x3x16x16xf32, #tpu.memory_space<vmem>>, vector<1x3x16x16xf32>
    %1 = vector.shape_cast %0 : vector<1x3x16x16xf32> to vector<3x16x16xf32>
    %c0_3 = arith.constant 0 : index
    %c0_4 = arith.constant 0 : index
    %c0_5 = arith.constant 0 : index
    %c0_6 = arith.constant 0 : index
    %2 = vector.load %arg4[%c0_3, %c0_4, %c0_5, %c0_6] : memref<1x3x16x16xf32, #tpu.memory_space<vmem>>, vector<1x3x16x16xf32>
    %3 = vector.shape_cast %2 : vector<1x3x16x16xf32> to vector<3x16x16xf32>
    %4 = arith.subf %1, %3 : vector<3x16x16xf32>
    %5 = vector.extract_strided_slice %4 {offsets = [0, 0, 0], sizes = [1, 16, 16], strides = [1, 1, 1]} : vector<3x16x16xf32> to vector<1x16x16xf32>
    %6 = vector.shape_cast %5 : vector<1x16x16xf32> to vector<16x16xf32>
    %7 = vector.extract_strided_slice %4 {offsets = [1, 0, 0], sizes = [1, 16, 16], strides = [1, 1, 1]} : vector<3x16x16xf32> to vector<1x16x16xf32>
    %8 = vector.shape_cast %7 : vector<1x16x16xf32> to vector<16x16xf32>
    %9 = vector.extract_strided_slice %4 {offsets = [2, 0, 0], sizes = [1, 16, 16], strides = [1, 1, 1]} : vector<3x16x16xf32> to vector<1x16x16xf32>
    %10 = vector.shape_cast %9 : vector<1x16x16xf32> to vector<16x16xf32>
    %cst = arith.constant 6.548100e+01 : f32
    %11 = vector.broadcast %cst : f32 to vector<16x16xf32>
    %12 = arith.mulf %11, %6 : vector<16x16xf32>
    %cst_7 = arith.constant 1.285530e+02 : f32
    %13 = vector.broadcast %cst_7 : f32 to vector<16x16xf32>
    %14 = arith.mulf %13, %8 : vector<16x16xf32>
    %15 = arith.addf %12, %14 : vector<16x16xf32>
    %cst_8 = arith.constant 2.496600e+01 : f32
    %16 = vector.broadcast %cst_8 : f32 to vector<16x16xf32>
    %17 = arith.mulf %16, %10 : vector<16x16xf32>
    %18 = arith.addf %15, %17 : vector<16x16xf32>
    %cst_9 = arith.constant -3.779700e+01 : f32
    %19 = vector.broadcast %cst_9 : f32 to vector<16x16xf32>
    %20 = arith.mulf %19, %6 : vector<16x16xf32>
    %cst_10 = arith.constant 7.420300e+01 : f32
    %21 = vector.broadcast %cst_10 : f32 to vector<16x16xf32>
    %22 = arith.mulf %21, %8 : vector<16x16xf32>
    %23 = arith.subf %20, %22 : vector<16x16xf32>
    %cst_11 = arith.constant 1.120000e+02 : f32
    %24 = vector.broadcast %cst_11 : f32 to vector<16x16xf32>
    %25 = arith.mulf %24, %10 : vector<16x16xf32>
    %26 = arith.addf %23, %25 : vector<16x16xf32>
    %cst_12 = arith.constant 1.120000e+02 : f32
    %27 = vector.broadcast %cst_12 : f32 to vector<16x16xf32>
    %28 = arith.mulf %27, %6 : vector<16x16xf32>
    %cst_13 = arith.constant 9.378600e+01 : f32
    %29 = vector.broadcast %cst_13 : f32 to vector<16x16xf32>
    %30 = arith.mulf %29, %8 : vector<16x16xf32>
    %31 = arith.subf %28, %30 : vector<16x16xf32>
    %cst_14 = arith.constant 1.821400e+01 : f32
    %32 = vector.broadcast %cst_14 : f32 to vector<16x16xf32>
    %33 = arith.mulf %32, %10 : vector<16x16xf32>
    %34 = arith.subf %31, %33 : vector<16x16xf32>
    %c0_15 = arith.constant 0 : index
    %c0_16 = arith.constant 0 : index
    %35 = vector.load %arg6[%c0_15, %c0_16] : memref<16x16xbf16, #tpu.memory_space<vmem>>, vector<16x16xbf16>
    %c0_17 = arith.constant 0 : index
    %c0_18 = arith.constant 0 : index
    %36 = vector.load %arg7[%c0_17, %c0_18] : memref<16x16xbf16, #tpu.memory_space<vmem>>, vector<16x16xbf16>
    %cst_19 = arith.constant 0.000000e+00 : f32
    %37 = vector.broadcast %cst_19 : f32 to vector<16x16xf32>
    %38 = arith.truncf %18 : vector<16x16xf32> to vector<16x16xbf16>
    %cst_20 = arith.constant dense<0.000000e+00> : vector<16x16xf32>
    %39 = tpu.matmul %38, %36, %cst_20 {dimension_numbers = #tpu.dot_dimension_numbers<[1], [0], [0], [1], [0, 0, 1, 1], [], []>} : vector<16x16xbf16>, vector<16x16xbf16>, vector<16x16xf32> -> vector<16x16xf32>
    %40 = arith.truncf %39 : vector<16x16xf32> to vector<16x16xbf16>
    %cst_21 = arith.constant dense<0.000000e+00> : vector<16x16xf32>
    %41 = tpu.matmul %35, %40, %cst_21 {dimension_numbers = #tpu.dot_dimension_numbers<[1], [0], [0], [1], [0, 0, 1, 1], [], []>} : vector<16x16xbf16>, vector<16x16xbf16>, vector<16x16xf32> -> vector<16x16xf32>
    %42 = arith.mulf %41, %41 : vector<16x16xf32>
    %c0_22 = arith.constant 0 : index
    %c0_23 = arith.constant 0 : index
    %c0_24 = arith.constant 0 : index
    %43 = vector.load %arg5[%c0_22, %c0_23, %c0_24] : memref<3x16x16xf32, #tpu.memory_space<vmem>>, vector<1x16x16xf32>
    %44 = vector.shape_cast %43 : vector<1x16x16xf32> to vector<16x16xf32>
    %45 = arith.mulf %42, %44 : vector<16x16xf32>
    %46 = arith.addf %37, %45 : vector<16x16xf32>
    %47 = arith.truncf %26 : vector<16x16xf32> to vector<16x16xbf16>
    %cst_25 = arith.constant dense<0.000000e+00> : vector<16x16xf32>
    %48 = tpu.matmul %47, %36, %cst_25 {dimension_numbers = #tpu.dot_dimension_numbers<[1], [0], [0], [1], [0, 0, 1, 1], [], []>} : vector<16x16xbf16>, vector<16x16xbf16>, vector<16x16xf32> -> vector<16x16xf32>
    %49 = arith.truncf %48 : vector<16x16xf32> to vector<16x16xbf16>
    %cst_26 = arith.constant dense<0.000000e+00> : vector<16x16xf32>
    %50 = tpu.matmul %35, %49, %cst_26 {dimension_numbers = #tpu.dot_dimension_numbers<[1], [0], [0], [1], [0, 0, 1, 1], [], []>} : vector<16x16xbf16>, vector<16x16xbf16>, vector<16x16xf32> -> vector<16x16xf32>
    %51 = arith.mulf %50, %50 : vector<16x16xf32>
    %c1 = arith.constant 1 : index
    %c0_27 = arith.constant 0 : index
    %c0_28 = arith.constant 0 : index
    %52 = vector.load %arg5[%c1, %c0_27, %c0_28] : memref<3x16x16xf32, #tpu.memory_space<vmem>>, vector<1x16x16xf32>
    %53 = vector.shape_cast %52 : vector<1x16x16xf32> to vector<16x16xf32>
    %54 = arith.mulf %51, %53 : vector<16x16xf32>
    %55 = arith.addf %46, %54 : vector<16x16xf32>
    %56 = arith.truncf %34 : vector<16x16xf32> to vector<16x16xbf16>
    %cst_29 = arith.constant dense<0.000000e+00> : vector<16x16xf32>
    %57 = tpu.matmul %56, %36, %cst_29 {dimension_numbers = #tpu.dot_dimension_numbers<[1], [0], [0], [1], [0, 0, 1, 1], [], []>} : vector<16x16xbf16>, vector<16x16xbf16>, vector<16x16xf32> -> vector<16x16xf32>
    %58 = arith.truncf %57 : vector<16x16xf32> to vector<16x16xbf16>
    %cst_30 = arith.constant dense<0.000000e+00> : vector<16x16xf32>
    %59 = tpu.matmul %35, %58, %cst_30 {dimension_numbers = #tpu.dot_dimension_numbers<[1], [0], [0], [1], [0, 0, 1, 1], [], []>} : vector<16x16xbf16>, vector<16x16xbf16>, vector<16x16xf32> -> vector<16x16xf32>
    %60 = arith.mulf %59, %59 : vector<16x16xf32>
    %c2 = arith.constant 2 : index
    %c0_31 = arith.constant 0 : index
    %c0_32 = arith.constant 0 : index
    %61 = vector.load %arg5[%c2, %c0_31, %c0_32] : memref<3x16x16xf32, #tpu.memory_space<vmem>>, vector<1x16x16xf32>
    %62 = vector.shape_cast %61 : vector<1x16x16xf32> to vector<16x16xf32>
    %63 = arith.mulf %60, %62 : vector<16x16xf32>
    %64 = arith.addf %55, %63 : vector<16x16xf32>
    %cst_33 = arith.constant 0.000000e+00 : f32
    %65 = vector.broadcast %cst_33 : f32 to vector<8x16xf32>
    %66 = vector.extract_strided_slice %64 {offsets = [0, 0], sizes = [8, 16], strides = [1, 1]} : vector<16x16xf32> to vector<8x16xf32>
    %67 = arith.addf %65, %66 : vector<8x16xf32>
    %68 = vector.extract_strided_slice %64 {offsets = [8, 0], sizes = [8, 16], strides = [1, 1]} : vector<16x16xf32> to vector<8x16xf32>
    %69 = arith.addf %67, %68 : vector<8x16xf32>
    %c0_34 = arith.constant 0 : index
    %c0_35 = arith.constant 0 : index
    %c0_36 = arith.constant 0 : index
    %c0_37 = arith.constant 0 : index
    %c0_38 = arith.constant 0 : index
    %70 = vector.load %arg8[%c0_34, %c0_35, %c0_36, %c0_37, %c0_38] : memref<1x1x1x8x16xf32, #tpu.memory_space<vmem>>, vector<1x1x1x8x16xf32>
    %71 = vector.shape_cast %70 : vector<1x1x1x8x16xf32> to vector<8x16xf32>
    %72 = vector.shape_cast %69 : vector<8x16xf32> to vector<1x1x1x8x16xf32>
    tpu.vector_store %arg8[%c0_34, %c0_35, %c0_36, %c0_37, %c0_38], %72 {strides = array<i32>} : memref<1x1x1x8x16xf32, #tpu.memory_space<vmem>>, vector<1x1x1x8x16xf32>,
    return
  }
  func.func @transform_0(%arg0: i32, %arg1: i32, %arg2: i32) -> (i32, i32, i32, i32) {
    %c0_i32 = arith.constant 0 : i32
    %c0_i32_0 = arith.constant 0 : i32
    return %arg0, %c0_i32, %arg1, %arg2 : i32, i32, i32, i32
  }
  func.func @transform_1(%arg0: i32, %arg1: i32, %arg2: i32) -> (i32, i32, i32, i32) {
    %c0_i32 = arith.constant 0 : i32
    %c0_i32_0 = arith.constant 0 : i32
    return %arg0, %c0_i32, %arg1, %arg2 : i32, i32, i32, i32
  }
  func.func @transform_2(%arg0: i32, %arg1: i32, %arg2: i32) -> (i32, i32, i32) {
    %c0_i32 = arith.constant 0 : i32
    %c0_i32_0 = arith.constant 0 : i32
    %c0_i32_1 = arith.constant 0 : i32
    %c0_i32_2 = arith.constant 0 : i32
    return %c0_i32, %c0_i32_0, %c0_i32_1 : i32, i32, i32
  }
  func.func @transform_3(%arg0: i32, %arg1: i32, %arg2: i32) -> (i32, i32) {
    %c0_i32 = arith.constant 0 : i32
    %c0_i32_0 = arith.constant 0 : i32
    %c0_i32_1 = arith.constant 0 : i32
    return %c0_i32, %c0_i32_0 : i32, i32
  }
  func.func @transform_4(%arg0: i32, %arg1: i32, %arg2: i32) -> (i32, i32) {
    %c0_i32 = arith.constant 0 : i32
    %c0_i32_0 = arith.constant 0 : i32
    %c0_i32_1 = arith.constant 0 : i32
    return %c0_i32, %c0_i32_0 : i32, i32
  }
  func.func @transform_5(%arg0: i32, %arg1: i32, %arg2: i32) -> (i32, i32, i32, i32, i32) {
    %c0_i32 = arith.constant 0 : i32
    %c0_i32_0 = arith.constant 0 : i32
    %c0_i32_1 = arith.constant 0 : i32
    return %arg0, %arg1, %arg2, %c0_i32, %c0_i32_0 : i32, i32, i32, i32, i32
  }
}

</mosaic_0001>

<llo_original>
// kernel: tpu_custom_call.1
$region0: #{tpu_custom_call.1}
  #allocation0 [shape = 'u32[]', space=smem, size = 0x4, offset = 0x4, fixed_abs, tag = 'smem constant byte address 0x4 - core index']
  #allocation1 [shape = 'u32[144,128]{1,0:T(1,128)}', space=vmem, size = 0x12000, scoped, tag = 'internal scratch']
  %s0 = inlined_call_operand.hbm [shape: f32[2,3,16,16], index: 0, kind: input, shape index: {}]
  %s1 = inlined_call_operand.hbm [shape: f32[2,3,16,16], index: 1, kind: input, shape index: {}]
  %s2 = inlined_call_operand.hbm [shape: f32[3,16,16], index: 2, kind: input, shape index: {}]
  %s3 = inlined_call_operand.vmem [shape: bf16[16,16], index: 3, kind: input, shape index: {}]
  %s4 = inlined_call_operand.hbm [shape: bf16[16,16], index: 4, kind: input, shape index: {}]
  %s5 = inlined_call_operand.hbm [shape: f32[2,1,1,8,16], index: 5, kind: output, shape index: {}]
  %s6 = sld [smem:[#allocation0]]
  $region69: #{tpu_custom_call.1} parent=0
    _
  %s8 = ssub.s32 1, %s6
  %s9 = scalar_select 0, %s8, %s6
  $region1: #{tpu_custom_call.1} parent=0
    #allocation2 [shape = 'u8[49152]{0}', space=vmem, size = 0xc000, scoped, tag = 'input window, operand 0']
    #allocation3 [shape = 's32[2]{0}', space=sflag, size = 0x8, scoped, tag = 'scoped memory for tpu_custom_call.1']
    #allocation4 [shape = 's32[2]{0}', space=sflag, size = 0x8, scoped, tag = 'scoped memory for tpu_custom_call.1']
    #allocation5 [shape = 'u8[49152]{0}', space=vmem, size = 0xc000, scoped, tag = 'input window, operand 1']
    #allocation6 [shape = 's32[2]{0}', space=sflag, size = 0x8, scoped, tag = 'scoped memory for tpu_custom_call.1']
    #allocation7 [shape = 'u8[24576]{0}', space=vmem, size = 0x6000, scoped, tag = 'input window, operand 2, single buffered']
    #allocation8 [shape = 'u8[4096]{0}', space=vmem, size = 0x1000, scoped, tag = 'input window, operand 4, single buffered']
    #allocation9 [shape = 's32[1]{0}', space=sflag, size = 0x4, scoped, tag = 'scoped memory for tpu_custom_call.1']
    #allocation10 [shape = 'u8[8192]{0}', space=vmem, size = 0x2000, scoped, tag = 'output window, operand 0']
    %10 = vsyncpa [#allocation3], 0
    %s11 = scalar_lea.sflag [#allocation3], 1
    %12 = vsyncpa %s11, 0
    %13 = vsyncpa [#allocation6], 0
    %s14 = scalar_lea.sflag [#allocation6], 1
    %15 = vsyncpa %s14, 0
    %16 = vsyncpa [#allocation9], 0
    %17 = vsyncpa [#allocation4], 0
    %s18 = scalar_lea.sflag [#allocation4], 1
    %19 = vsyncpa %s18, 0
    loop: start=0, step=1, limit=4
    $region2: #{tpu_custom_call.1} parent=1 // loop_pre_header
      _
    $region3: #{tpu_custom_call.1} parent=1 // loop_header
      %s21 = sphi 0, %s25
      %p22 = scmp.ge.s32.totalorder %s21, 4
      %s28 = sphi 0, %s47
      %s29 = sphi 0, %s43
      %s30 = sphi 0, %s39
      %s31 = sphi 0, %s28
      %s32 = sphi 0, %s29
      %s33 = sphi 0, %s30
      %s34 = sphi 0, %s31
      %s35 = sphi 0, %s32
      %s36 = sphi 0, %s33
      %s54 = sphi 0, %s56
      %s57 = sphi 0, %s54
      %s58 = sphi 0, %s57
      %s74 = sphi 0, %s58
      %s84 = sphi 0, %s86
      %s87 = sphi 0, %s84
      %s88 = sphi 0, %s87
      %s104 = sphi 0, %s88
      %s108 = sphi 0, %s108
      %s110 = sphi 0, %s108
      %s111 = sphi 0, %s110
      %s125 = sphi 0, %s111
      %s129 = sphi 0, %s129
      %s131 = sphi 0, %s129
      %s132 = sphi 0, %s131
      %s146 = sphi 0, %s132
      %s150 = sphi 0, %s150
      %s152 = sphi 0, %s150
      %s153 = sphi 0, %s152
      %s167 = sphi 0, %s153
      %s177 = sphi 0, %s179
      %s180 = sphi 0, %s177
      %s181 = sphi 0, %s180
      %s197 = sphi 0, %s181
    $region4: #{tpu_custom_call.1} parent=1 // loop_header_branch
      %24 = sbr.rel (%p22) target = $region8
    $region5: #{tpu_custom_call.1} parent=1 // loop_body
      %s26 = ssub.s32 %s21, 1
      %s27 = ssub.s32 %s21, 2
      %s37 = sadd.s32 1, %s30
      %p38 = scmp.ge.s32.totalorder %s37, 1
      %s39 = scalar_select %p38, 0, %s37
      %s40 = sadd.s32 1, %s29
      %s41 = scalar_select %p38, %s40, %s29
      %p42 = scmp.ge.s32.totalorder %s41, 1
      %s43 = scalar_select %p42, 0, %s41
      %s44 = sadd.s32 1, %s28
      %s45 = scalar_select %p42, %s44, %s28
      %p46 = scmp.ge.s32.totalorder %s45, 2
      %s47 = scalar_select %p46, 0, %s45
      %s48 = ssub.s32 %s28, %s47
      %s49 = ssub.s32 %s29, %s43
      %s50 = sor.u32 %s48, %s49
      %s51 = ssub.s32 %s30, %s39
      %s52 = sor.u32 %s50, %s51
      %p53 = scmp.eq.s32.totalorder %s52, 0
      %s55 = sadd.s32 %s54, 1
      %s56 = scalar_select %p53, %s54, %s55
      %p59 = pneg %p53
      %p60 = scmp.eq.s32.totalorder %s21, 1
      %p61 = por %p59, %p60
      %p62 = scmp.ne.s32.totalorder %s54, %s57
      %p63 = scmp.eq.s32.totalorder %s21, 0
      %p64 = por %p62, %p63
      %p65 = scmp.ne.s32.totalorder %s54, %s57
      %p66 = scmp.eq.s32.totalorder %s26, 1
      %p67 = por %p65, %p66
      %p68 = scmp.ne.s32.totalorder %s57, %s58
      %p69 = scmp.eq.s32.totalorder %s26, 0
      %p70 = por %p68, %p69
      %p71 = scmp.ne.s32.totalorder %s57, %s58
      %p72 = scmp.eq.s32.totalorder %s27, 1
      %p73 = por %p71, %p72
      %p75 = scmp.ne.s32.totalorder %s58, %s74
      %p76 = scmp.eq.s32.totalorder %s27, 0
      %p77 = por %p75, %p76
      %s78 = ssub.s32 %s28, %s47
      %s79 = ssub.s32 %s29, %s43
      %s80 = sor.u32 %s78, %s79
      %s81 = ssub.s32 %s30, %s39
      %s82 = sor.u32 %s80, %s81
      %p83 = scmp.eq.s32.totalorder %s82, 0
      %s85 = sadd.s32 %s84, 1
      %s86 = scalar_select %p83, %s84, %s85
      %p89 = pneg %p83
      %p90 = scmp.eq.s32.totalorder %s21, 1
      %p91 = por %p89, %p90
      %p92 = scmp.ne.s32.totalorder %s84, %s87
      %p93 = scmp.eq.s32.totalorder %s21, 0
      %p94 = por %p92, %p93
      %p95 = scmp.ne.s32.totalorder %s84, %s87
      %p96 = scmp.eq.s32.totalorder %s26, 1
      %p97 = por %p95, %p96
      %p98 = scmp.ne.s32.totalorder %s87, %s88
      %p99 = scmp.eq.s32.totalorder %s26, 0
      %p100 = por %p98, %p99
      %p101 = scmp.ne.s32.totalorder %s87, %s88
      %p102 = scmp.eq.s32.totalorder %s27, 1
      %p103 = por %p101, %p102
      %p105 = scmp.ne.s32.totalorder %s88, %s104
      %p106 = scmp.eq.s32.totalorder %s27, 0
      %p107 = por %p105, %p106
      %s109 = sadd.s32 %s108, 1
      %p112 = scmp.eq.s32.totalorder %s21, 1
      %p113 = scmp.ne.s32.totalorder %s108, %s110
      %p114 = scmp.eq.s32.totalorder %s21, 0
      %p115 = por %p113, %p114
      %p116 = scmp.ne.s32.totalorder %s108, %s110
      %p117 = scmp.eq.s32.totalorder %s26, 1
      %p118 = por %p116, %p117
      %p119 = scmp.ne.s32.totalorder %s110, %s111
      %p120 = scmp.eq.s32.totalorder %s26, 0
      %p121 = por %p119, %p120
      %p122 = scmp.ne.s32.totalorder %s110, %s111
      %p123 = scmp.eq.s32.totalorder %s27, 1
      %p124 = por %p122, %p123
      %p126 = scmp.ne.s32.totalorder %s111, %s125
      %p127 = scmp.eq.s32.totalorder %s27, 0
      %p128 = por %p126, %p127
      %s130 = sadd.s32 %s129, 1
      %p133 = scmp.eq.s32.totalorder %s21, 1
      %p134 = scmp.ne.s32.totalorder %s129, %s131
      %p135 = scmp.eq.s32.totalorder %s21, 0
      %p136 = por %p134, %p135
      %p137 = scmp.ne.s32.totalorder %s129, %s131
      %p138 = scmp.eq.s32.totalorder %s26, 1
      %p139 = por %p137, %p138
      %p140 = scmp.ne.s32.totalorder %s131, %s132
      %p141 = scmp.eq.s32.totalorder %s26, 0
      %p142 = por %p140, %p141
      %p143 = scmp.ne.s32.totalorder %s131, %s132
      %p144 = scmp.eq.s32.totalorder %s27, 1
      %p145 = por %p143, %p144
      %p147 = scmp.ne.s32.totalorder %s132, %s146
      %p148 = scmp.eq.s32.totalorder %s27, 0
      %p149 = por %p147, %p148
      %s151 = sadd.s32 %s150, 1
      %p154 = scmp.eq.s32.totalorder %s21, 1
      %p155 = scmp.ne.s32.totalorder %s150, %s152
      %p156 = scmp.eq.s32.totalorder %s21, 0
      %p157 = por %p155, %p156
      %p158 = scmp.ne.s32.totalorder %s150, %s152
      %p159 = scmp.eq.s32.totalorder %s26, 1
      %p160 = por %p158, %p159
      %p161 = scmp.ne.s32.totalorder %s152, %s153
      %p162 = scmp.eq.s32.totalorder %s26, 0
      %p163 = por %p161, %p162
      %p164 = scmp.ne.s32.totalorder %s152, %s153
      %p165 = scmp.eq.s32.totalorder %s27, 1
      %p166 = por %p164, %p165
      %p168 = scmp.ne.s32.totalorder %s153, %s167
      %p169 = scmp.eq.s32.totalorder %s27, 0
      %p170 = por %p168, %p169
      %s171 = ssub.s32 %s28, %s47
      %s172 = ssub.s32 %s29, %s43
      %s173 = sor.u32 %s171, %s172
      %s174 = ssub.s32 %s30, %s39
      %s175 = sor.u32 %s173, %s174
      %p176 = scmp.eq.s32.totalorder %s175, 0
      %s178 = sadd.s32 %s177, 1
      %s179 = scalar_select %p176, %s177, %s178
      %p182 = pneg %p176
      %p183 = scmp.eq.s32.totalorder %s21, 1
      %p184 = por %p182, %p183
      %p185 = scmp.ne.s32.totalorder %s177, %s180
      %p186 = scmp.eq.s32.totalorder %s21, 0
      %p187 = por %p185, %p186
      %p188 = scmp.ne.s32.totalorder %s177, %s180
      %p189 = scmp.eq.s32.totalorder %s26, 1
      %p190 = por %p188, %p189
      %p191 = scmp.ne.s32.totalorder %s180, %s181
      %p192 = scmp.eq.s32.totalorder %s26, 0
      %p193 = por %p191, %p192
      %p194 = scmp.ne.s32.totalorder %s180, %s181
      %p195 = scmp.eq.s32.totalorder %s27, 1
      %p196 = por %p194, %p195
      %p198 = scmp.ne.s32.totalorder %s181, %s197
      %p199 = scmp.eq.s32.totalorder %s27, 0
      %p200 = por %p198, %p199
      %p201 = scmp.le.s32.totalorder 1, %s21
      %p202 = scmp.lt.s32.totalorder %s21, 3
      %p203 = pnand %p201, %p202
      %p204 = pneg %p203
      // Predicated region
      $region9: #{tpu_custom_call.1} parent=5 // pred_check
        _
      $region10: #{tpu_custom_call.1} parent=5 // pred_check_branch
        %206 = sbr.rel (%p203) target = $region12
      $region11: #{tpu_custom_call.1} parent=5 // pred_region
        %s207 = ssub.s32 %s21, 1
        // Predicated region
        $region13: #{tpu_custom_call.1} parent=11 // pred_check
          %p208 = pneg %p121
        $region14: #{tpu_custom_call.1} parent=11 // pred_check_branch
          %210 = sbr.rel (%p208) target = $region16
        $region15: #{tpu_custom_call.1} parent=11 // pred_region
          %s212 = ssub.s32 768, 768
          %213 = vsyncadd [#allocation6], %s212
          %s214 = sshll.u32 [#allocation7], 4
          %s215 = int_to_ptr.vmem [resolvable:$true] %s214
          %220 = dma.hbm_to_vmem [thread:$0]  %s2, 768, %s215, [#allocation6], 128, 128, 8
        $region16: #{tpu_custom_call.1} parent=11 // pred_fallthru
          _
        // Predicated region
        $region17: #{tpu_custom_call.1} parent=11 // pred_check
          %p221 = pneg %p142
        $region18: #{tpu_custom_call.1} parent=11 // pred_check_branch
          %223 = sbr.rel (%p221) target = $region20
        $region19: #{tpu_custom_call.1} parent=11 // pred_region
          _
        $region20: #{tpu_custom_call.1} parent=11 // pred_fallthru
          _
        // Predicated region
        $region21: #{tpu_custom_call.1} parent=11 // pred_check
          %p224 = pneg %p163
        $region22: #{tpu_custom_call.1} parent=11 // pred_check_branch
          %226 = sbr.rel (%p224) target = $region24
        $region23: #{tpu_custom_call.1} parent=11 // pred_region
          %s228 = ssub.s32 128, 128
          %229 = vsyncadd [#allocation9], %s228
          %s230 = sshll.u32 [#allocation8], 4
          %s231 = int_to_ptr.vmem [resolvable:$true] %s230
          %236 = dma.hbm_to_vmem [thread:$0]  %s4, 128, %s231, [#allocation9], 64, 64, 4
        $region24: #{tpu_custom_call.1} parent=11 // pred_fallthru
          _
      $region12: #{tpu_custom_call.1} parent=5 // pred_fallthru
        _
      %p237 = scmp.lt.s32.totalorder %s21, 2
      // Predicated region
      $region25: #{tpu_custom_call.1} parent=5 // pred_check
        %p238 = pneg %p237
      $region26: #{tpu_custom_call.1} parent=5 // pred_check_branch
        %240 = sbr.rel (%p238) target = $region28
      $region27: #{tpu_custom_call.1} parent=5 // pred_region
        // Predicated region
        $region29: #{tpu_custom_call.1} parent=27 // pred_check
          %p241 = pneg %p64
        $region30: #{tpu_custom_call.1} parent=27 // pred_check_branch
          %243 = sbr.rel (%p241) target = $region32
        $region31: #{tpu_custom_call.1} parent=27 // pred_region
          %s244 = sand.u32 %s54, 1
          %s245 = scalar_lea.sflag [#allocation3], %s244
          %s246 = sand.u32 %s54, 1
          %s247 = smul.addr %s246, 48
          %s248 = scalar_lea.vmem [#allocation2], %s247
          %s249 = smul.u32 2, %s29
          %s251 = ssub.s32 768, 768
          %252 = vsyncadd %s245, %s251
          %s253 = sadd.s32 %s30, %s249
          %s254 = smul.addr %s28, 6
          %s255 = sadd.s32 %s253, %s254
          %s256 = smul.addr %s255, 128
          %s257 = scalar_lea.hbm %s0, %s256
          %s258 = sshll.u32 %s248, 4
          %s259 = int_to_ptr.vmem [resolvable:$true] %s258
          %264 = dma.hbm_to_vmem [thread:$0]  %s257, 768, %s259, %s245, 128, 128, 8
        $region32: #{tpu_custom_call.1} parent=27 // pred_fallthru
          _
        // Predicated region
        $region33: #{tpu_custom_call.1} parent=27 // pred_check
          %p265 = pneg %p94
        $region34: #{tpu_custom_call.1} parent=27 // pred_check_branch
          %267 = sbr.rel (%p265) target = $region36
        $region35: #{tpu_custom_call.1} parent=27 // pred_region
          %s268 = sand.u32 %s21, 1
          %s269 = scalar_lea.sflag [#allocation6], %s268
          %s270 = sand.u32 %s84, 1
          %s271 = smul.addr %s270, 48
          %s272 = scalar_lea.vmem [#allocation5], %s271
          %s273 = smul.u32 2, %s29
          %s275 = ssub.s32 768, 768
          %276 = vsyncadd %s269, %s275
          %s277 = sadd.s32 %s30, %s273
          %s278 = smul.addr %s28, 6
          %s279 = sadd.s32 %s277, %s278
          %s280 = smul.addr %s279, 128
          %s281 = scalar_lea.hbm %s1, %s280
          %s282 = sshll.u32 %s272, 4
          %s283 = int_to_ptr.vmem [resolvable:$true] %s282
          %288 = dma.hbm_to_vmem [thread:$0]  %s281, 768, %s283, %s269, 128, 128, 8
        $region36: #{tpu_custom_call.1} parent=27 // pred_fallthru
          _
      $region28: #{tpu_custom_call.1} parent=5 // pred_fallthru
        _
      %p289 = scmp.le.s32.totalorder 1, %s21
      %p290 = scmp.lt.s32.totalorder %s21, 3
      %p291 = pnand %p289, %p290
      %p292 = pneg %p291
      // Predicated region
      $region37: #{tpu_custom_call.1} parent=5 // pred_check
        _
      $region38: #{tpu_custom_call.1} parent=5 // pred_check_branch
        %294 = sbr.rel (%p291) target = $region40
      $region39: #{tpu_custom_call.1} parent=5 // pred_region
        %s295 = ssub.s32 %s21, 1
        %s296 = sand.u32 %s57, 1
        %s297 = scalar_lea.sflag [#allocation3], %s296
        %s298 = sand.u32 %s57, 1
        %s299 = smul.addr %s298, 48
        %s300 = scalar_lea.vmem [#allocation2], %s299
        // Predicated region
        $region41: #{tpu_custom_call.1} parent=39 // pred_check
          %p301 = pneg %p70
        $region42: #{tpu_custom_call.1} parent=39 // pred_check_branch
          %303 = sbr.rel (%p301) target = $region44
        $region43: #{tpu_custom_call.1} parent=39 // pred_region
          %304 = dma.done %s297, 768
        $region44: #{tpu_custom_call.1} parent=39 // pred_fallthru
          _
        %s305 = sand.u32 %s26, 1
        %s306 = scalar_lea.sflag [#allocation6], %s305
        %s307 = sand.u32 %s87, 1
        %s308 = smul.addr %s307, 48
        %s309 = scalar_lea.vmem [#allocation5], %s308
        // Predicated region
        $region45: #{tpu_custom_call.1} parent=39 // pred_check
          %p310 = pneg %p100
        $region46: #{tpu_custom_call.1} parent=39 // pred_check_branch
          %312 = sbr.rel (%p310) target = $region48
        $region47: #{tpu_custom_call.1} parent=39 // pred_region
          %313 = dma.done %s306, 768
        $region48: #{tpu_custom_call.1} parent=39 // pred_fallthru
          _
        // Predicated region
        $region49: #{tpu_custom_call.1} parent=39 // pred_check
          %p314 = pneg %p121
        $region50: #{tpu_custom_call.1} parent=39 // pred_check_branch
          %316 = sbr.rel (%p314) target = $region52
        $region51: #{tpu_custom_call.1} parent=39 // pred_region
          %317 = dma.done [#allocation6], 768
        $region52: #{tpu_custom_call.1} parent=39 // pred_fallthru
          _
        // Predicated region
        $region53: #{tpu_custom_call.1} parent=39 // pred_check
          %p318 = pneg %p163
        $region54: #{tpu_custom_call.1} parent=39 // pred_check_branch
          %320 = sbr.rel (%p318) target = $region56
        $region55: #{tpu_custom_call.1} parent=39 // pred_region
          %321 = dma.done [#allocation9], 128
        $region56: #{tpu_custom_call.1} parent=39 // pred_fallthru
          _
        %s322 = sand.u32 %s57, 1
        %s323 = scalar_lea.sflag [#allocation3], %s322
        %s324 = sand.u32 %s57, 1
        %s325 = smul.addr %s324, 48
        %s326 = scalar_lea.vmem [#allocation2], %s325
        %p327 = pneg %p70
        %p328 = pneg %p67
        %s329 = sand.u32 %s26, 1
        %s330 = scalar_lea.sflag [#allocation6], %s329
        %s331 = sand.u32 %s87, 1
        %s332 = smul.addr %s331, 48
        %s333 = scalar_lea.vmem [#allocation5], %s332
        %p334 = pneg %p100
        %p335 = pneg %p97
        %p336 = pneg %p121
        %p337 = pneg %p118
        %p338 = pneg %p142
        %p339 = pneg %p139
        %p340 = pneg %p163
        %p341 = pneg %p160
        %p342 = pneg %p193
        %p343 = pneg %p190
        %s344 = sand.u32 %s180, 1
        %s345 = scalar_lea.sflag [#allocation4], %s344
        %s346 = sand.u32 %s180, 1
        %s347 = smul.addr %s346, 8
        %s348 = scalar_lea.vmem [#allocation10], %s347
        %s349 = smul.u32 2, %s32
        %s350 = smul.u32 2, %s32
        %v352 = vld [vmem:[%s300] sm:$0xff]
        %v353 = vld [vmem:[%s300 + $0x8] sm:$0xff]
        %v354 = vld [vmem:[%s300 + $0x10] sm:$0xff]
        %v355 = vld [vmem:[%s300 + $0x18] sm:$0xff]
        %v356 = vld [vmem:[%s300 + $0x20] sm:$0xff]
        %v357 = vld [vmem:[%s300 + $0x28] sm:$0xff]
        %v358 = vld [vmem:[%s309] sm:$0xff]
        %v359 = vld [vmem:[%s309 + $0x8] sm:$0xff]
        %v360 = vld [vmem:[%s309 + $0x10] sm:$0xff]
        %v361 = vld [vmem:[%s309 + $0x18] sm:$0xff]
        %v362 = vld [vmem:[%s309 + $0x20] sm:$0xff]
        %v363 = vld [vmem:[%s309 + $0x28] sm:$0xff]
        %v364 = vsub.f32 %v352, %v358
        %v365 = vsub.f32 %v353, %v359
        %v366 = vsub.f32 %v354, %v360
        %v367 = vsub.f32 %v355, %v361
        %v368 = vsub.f32 %v356, %v362
        %v369 = vsub.f32 %v357, %v363
        %v370 = vmul.f32 %v364, 65.481
        %v371 = vmul.f32 %v365, 65.481
        %v372 = vmul.f32 %v366, 128.553
        %v373 = vmul.f32 %v367, 128.553
        %v374 = vadd.f32 %v370, %v372
        %v375 = vadd.f32 %v371, %v373
        %v376 = vmul.f32 %v368, 24.966
        %v377 = vmul.f32 %v369, 24.966
        %v378 = vadd.f32 %v374, %v376
        %v379 = vadd.f32 %v375, %v377
        %v380 = vmul.f32 %v364, -37.797
        %v381 = vmul.f32 %v365, -37.797
        %v382 = vmul.f32 %v366, 74.203
        %v383 = vmul.f32 %v367, 74.203
        %v384 = vsub.f32 %v380, %v382
        %v385 = vsub.f32 %v381, %v383
        %v386 = vmul.f32 %v368, 112.0
        %v387 = vmul.f32 %v369, 112.0
        %v388 = vadd.f32 %v384, %v386
        %v389 = vadd.f32 %v385, %v387
        %v390 = vmul.f32 %v364, 112.0
        %v391 = vmul.f32 %v365, 112.0
        %v392 = vmul.f32 %v366, 93.786
        %v393 = vmul.f32 %v367, 93.786
        %v394 = vsub.f32 %v390, %v392
        %v395 = vsub.f32 %v391, %v393
        %v396 = vmul.f32 %v368, 18.214
        %v397 = vmul.f32 %v369, 18.214
        %v398 = vsub.f32 %v394, %v396
        %v399 = vsub.f32 %v395, %v397
        %v400 = vld [vmem:[%s3] sm:$0xf]
        %v401 = vld [vmem:[%s3 + $0x4] sm:$0xf]
        %v402 = vld [vmem:[#allocation8] sm:$0xf]
        %v403 = vld [vmem:[#allocation8 + $0x4] sm:$0xf]
        %v404 = vpack.c.bf16 %v379, %v378
        %v407 = vunpack.c.l.b16 %v402
        %v408 = vunpack.c.l.b16 %v403
        %v409 = vpack.c.b16 %v408, %v407
        %vm411 = vcmask 130048
        %v413 = vsel %vm411, %v404, 0
        %415 = vmatprep.subr.bf16.mxu0 0
        %416 = vmatpush1.bf16.msra.mxu0 %v409
        %417 = vmatprep.subr.bf16.mxu0 0
        %418 = vmatpush1.bf16.msra.mxu0 0
        %419 = vmatprep.subr.bf16.mxu0 0
        %420 = vmatpush1.bf16.msra.mxu0 0
        %421 = vmatprep.subr.bf16.mxu0 0
        %422 = vmatpush1.bf16.msra.mxu0 0
        %423 = vmatprep.subr.bf16.mxu0 0
        %424 = vmatpush1.bf16.msra.mxu0 0
        %425 = vmatprep.subr.bf16.mxu0 0
        %426 = vmatpush1.bf16.msra.mxu0 0
        %427 = vmatprep.subr.bf16.mxu0 0
        %428 = vmatpush1.bf16.msra.mxu0 0
        %429 = vmatprep.subr.bf16.mxu0 0
        %430 = vmatpush1.bf16.msra.mxu0 0
        %431 = vmatprep.subr.bf16.mxu0 0
        %432 = vmatpush1.bf16.msra.mxu0 0
        %433 = vmatprep.subr.bf16.mxu0 0
        %434 = vmatpush1.bf16.msra.mxu0 0
        %435 = vmatprep.subr.bf16.mxu0 0
        %436 = vmatpush1.bf16.msra.mxu0 0
        %437 = vmatprep.subr.bf16.mxu0 0
        %438 = vmatpush1.bf16.msra.mxu0 0
        %439 = vmatprep.subr.bf16.mxu0 0
        %440 = vmatpush1.bf16.msra.mxu0 0
        %441 = vmatprep.subr.bf16.mxu0 0
        %442 = vmatpush1.bf16.msra.mxu0 0
        %443 = vmatprep.subr.bf16.mxu0 0
        %444 = vmatpush1.bf16.msra.mxu0 0
        %445 = vmatprep.subr.bf16.mxu0 0
        %446 = vmatpush1.bf16.msra.mxu0 0
        %447 = vmatprep.mubr.bf16.mxu0 0
        %448 = vmatmul.mubr.bf16.gmra.mrb[0].mxu0 %v413
        %v449 = vpop.f32.mrb[0].mxu0
        %v450 = vadd.f32 0.0, %v449
        %v451 = vpop.f32.mrb[0].mxu0
        %v452 = vpop.f32.mrb[0].mxu0
        %v453 = vadd.f32 0.0, %v452
        %v454 = vpop.f32.mrb[0].mxu0
        %455 = vdwg.mxu0
        %v456 = vpack.c.bf16 %v453, %v450
        %v459 = vunpack.c.l.b16 %v400
        %v460 = vunpack.c.l.b16 %v401
        %v461 = vpack.c.b16 %v460, %v459
        %v463 = vsel %vm411, %v461, 0
        %465 = vmatprep.subr.bf16.mxu0 0
        %466 = vmatpush1.bf16.msra.mxu0 %v456
        %467 = vmatprep.subr.bf16.mxu0 0
        %468 = vmatpush1.bf16.msra.mxu0 0
        %469 = vmatprep.subr.bf16.mxu0 0
        %470 = vmatpush1.bf16.msra.mxu0 0
        %471 = vmatprep.subr.bf16.mxu0 0
        %472 = vmatpush1.bf16.msra.mxu0 0
        %473 = vmatprep.subr.bf16.mxu0 0
        %474 = vmatpush1.bf16.msra.mxu0 0
        %475 = vmatprep.subr.bf16.mxu0 0
        %476 = vmatpush1.bf16.msra.mxu0 0
        %477 = vmatprep.subr.bf16.mxu0 0
        %478 = vmatpush1.bf16.msra.mxu0 0
        %479 = vmatprep.subr.bf16.mxu0 0
        %480 = vmatpush1.bf16.msra.mxu0 0
        %481 = vmatprep.subr.bf16.mxu0 0
        %482 = vmatpush1.bf16.msra.mxu0 0
        %483 = vmatprep.subr.bf16.mxu0 0
        %484 = vmatpush1.bf16.msra.mxu0 0
        %485 = vmatprep.subr.bf16.mxu0 0
        %486 = vmatpush1.bf16.msra.mxu0 0
        %487 = vmatprep.subr.bf16.mxu0 0
        %488 = vmatpush1.bf16.msra.mxu0 0
        %489 = vmatprep.subr.bf16.mxu0 0
        %490 = vmatpush1.bf16.msra.mxu0 0
        %491 = vmatprep.subr.bf16.mxu0 0
        %492 = vmatpush1.bf16.msra.mxu0 0
        %493 = vmatprep.subr.bf16.mxu0 0
        %494 = vmatpush1.bf16.msra.mxu0 0
        %495 = vmatprep.subr.bf16.mxu0 0
        %496 = vmatpush1.bf16.msra.mxu0 0
        %497 = vmatprep.mubr.bf16.mxu0 0
        %498 = vmatmul.mubr.bf16.gmra.mrb[0].mxu0 %v463
        %v499 = vpop.f32.mrb[0].mxu0
        %v500 = vadd.f32 0.0, %v499
        %v501 = vpop.f32.mrb[0].mxu0
        %v502 = vpop.f32.mrb[0].mxu0
        %v503 = vadd.f32 0.0, %v502
        %v504 = vpop.f32.mrb[0].mxu0
        %505 = vdwg.mxu0
        %v506 = vmul.f32 %v500, %v500
        %v507 = vmul.f32 %v503, %v503
        %v508 = vld [vmem:[#allocation7] sm:$0xff]
        %v509 = vld [vmem:[#allocation7 + $0x8] sm:$0xff]
        %v510 = vmul.f32 %v506, %v508
        %v511 = vmul.f32 %v507, %v509
        %v512 = vadd.f32 %v510, 0.0
        %v513 = vadd.f32 %v511, 0.0
        %v514 = vpack.c.bf16 %v389, %v388
        %v516 = vsel %vm411, %v514, 0
        %518 = vmatprep.subr.bf16.mxu0 0
        %519 = vmatpush1.bf16.msra.mxu0 %v409
        %520 = vmatprep.subr.bf16.mxu0 0
        %521 = vmatpush1.bf16.msra.mxu0 0
        %522 = vmatprep.subr.bf16.mxu0 0
        %523 = vmatpush1.bf16.msra.mxu0 0
        %524 = vmatprep.subr.bf16.mxu0 0
        %525 = vmatpush1.bf16.msra.mxu0 0
        %526 = vmatprep.subr.bf16.mxu0 0
        %527 = vmatpush1.bf16.msra.mxu0 0
        %528 = vmatprep.subr.bf16.mxu0 0
        %529 = vmatpush1.bf16.msra.mxu0 0
        %530 = vmatprep.subr.bf16.mxu0 0
        %531 = vmatpush1.bf16.msra.mxu0 0
        %532 = vmatprep.subr.bf16.mxu0 0
        %533 = vmatpush1.bf16.msra.mxu0 0
        %534 = vmatprep.subr.bf16.mxu0 0
        %535 = vmatpush1.bf16.msra.mxu0 0
        %536 = vmatprep.subr.bf16.mxu0 0
        %537 = vmatpush1.bf16.msra.mxu0 0
        %538 = vmatprep.subr.bf16.mxu0 0
        %539 = vmatpush1.bf16.msra.mxu0 0
        %540 = vmatprep.subr.bf16.mxu0 0
        %541 = vmatpush1.bf16.msra.mxu0 0
        %542 = vmatprep.subr.bf16.mxu0 0
        %543 = vmatpush1.bf16.msra.mxu0 0
        %544 = vmatprep.subr.bf16.mxu0 0
        %545 = vmatpush1.bf16.msra.mxu0 0
        %546 = vmatprep.subr.bf16.mxu0 0
        %547 = vmatpush1.bf16.msra.mxu0 0
        %548 = vmatprep.subr.bf16.mxu0 0
        %549 = vmatpush1.bf16.msra.mxu0 0
        %550 = vmatprep.mubr.bf16.mxu0 0
        %551 = vmatmul.mubr.bf16.gmra.mrb[0].mxu0 %v516
        %v552 = vpop.f32.mrb[0].mxu0
        %v553 = vadd.f32 0.0, %v552
        %v554 = vpop.f32.mrb[0].mxu0
        %v555 = vpop.f32.mrb[0].mxu0
        %v556 = vadd.f32 0.0, %v555
        %v557 = vpop.f32.mrb[0].mxu0
        %558 = vdwg.mxu0
        %v559 = vpack.c.bf16 %v556, %v553
        %560 = vmatprep.subr.bf16.mxu0 0
        %561 = vmatpush1.bf16.msra.mxu0 %v559
        %562 = vmatprep.subr.bf16.mxu0 0
        %563 = vmatpush1.bf16.msra.mxu0 0
        %564 = vmatprep.subr.bf16.mxu0 0
        %565 = vmatpush1.bf16.msra.mxu0 0
        %566 = vmatprep.subr.bf16.mxu0 0
        %567 = vmatpush1.bf16.msra.mxu0 0
        %568 = vmatprep.subr.bf16.mxu0 0
        %569 = vmatpush1.bf16.msra.mxu0 0
        %570 = vmatprep.subr.bf16.mxu0 0
        %571 = vmatpush1.bf16.msra.mxu0 0
        %572 = vmatprep.subr.bf16.mxu0 0
        %573 = vmatpush1.bf16.msra.mxu0 0
        %574 = vmatprep.subr.bf16.mxu0 0
        %575 = vmatpush1.bf16.msra.mxu0 0
        %576 = vmatprep.subr.bf16.mxu0 0
        %577 = vmatpush1.bf16.msra.mxu0 0
        %578 = vmatprep.subr.bf16.mxu0 0
        %579 = vmatpush1.bf16.msra.mxu0 0
        %580 = vmatprep.subr.bf16.mxu0 0
        %581 = vmatpush1.bf16.msra.mxu0 0
        %582 = vmatprep.subr.bf16.mxu0 0
        %583 = vmatpush1.bf16.msra.mxu0 0
        %584 = vmatprep.subr.bf16.mxu0 0
        %585 = vmatpush1.bf16.msra.mxu0 0
        %586 = vmatprep.subr.bf16.mxu0 0
        %587 = vmatpush1.bf16.msra.mxu0 0
        %588 = vmatprep.subr.bf16.mxu0 0
        %589 = vmatpush1.bf16.msra.mxu0 0
        %590 = vmatprep.subr.bf16.mxu0 0
        %591 = vmatpush1.bf16.msra.mxu0 0
        %592 = vmatprep.mubr.bf16.mxu0 0
        %593 = vmatmul.mubr.bf16.gmra.mrb[0].mxu0 %v463
        %v594 = vpop.f32.mrb[0].mxu0
        %v595 = vadd.f32 0.0, %v594
        %v596 = vpop.f32.mrb[0].mxu0
        %v597 = vpop.f32.mrb[0].mxu0
        %v598 = vadd.f32 0.0, %v597
        %v599 = vpop.f32.mrb[0].mxu0
        %600 = vdwg.mxu0
        %v601 = vmul.f32 %v595, %v595
        %v602 = vmul.f32 %v598, %v598
        %s603 = scalar_lea.vmem [#allocation7], 16
        %v604 = vld [vmem:[%s603] sm:$0xff]
        %v605 = vld [vmem:[%s603 + $0x8] sm:$0xff]
        %v606 = vmul.f32 %v601, %v604
        %v607 = vmul.f32 %v602, %v605
        %v608 = vadd.f32 %v512, %v606
        %v609 = vadd.f32 %v513, %v607
        %v610 = vpack.c.bf16 %v399, %v398
        %v612 = vsel %vm411, %v610, 0
        %614 = vmatprep.subr.bf16.mxu0 0
        %615 = vmatpush1.bf16.msra.mxu0 %v409
        %616 = vmatprep.subr.bf16.mxu0 0
        %617 = vmatpush1.bf16.msra.mxu0 0
        %618 = vmatprep.subr.bf16.mxu0 0
        %619 = vmatpush1.bf16.msra.mxu0 0
        %620 = vmatprep.subr.bf16.mxu0 0
        %621 = vmatpush1.bf16.msra.mxu0 0
        %622 = vmatprep.subr.bf16.mxu0 0
        %623 = vmatpush1.bf16.msra.mxu0 0
        %624 = vmatprep.subr.bf16.mxu0 0
        %625 = vmatpush1.bf16.msra.mxu0 0
        %626 = vmatprep.subr.bf16.mxu0 0
        %627 = vmatpush1.bf16.msra.mxu0 0
        %628 = vmatprep.subr.bf16.mxu0 0
        %629 = vmatpush1.bf16.msra.mxu0 0
        %630 = vmatprep.subr.bf16.mxu0 0
        %631 = vmatpush1.bf16.msra.mxu0 0
        %632 = vmatprep.subr.bf16.mxu0 0
        %633 = vmatpush1.bf16.msra.mxu0 0
        %634 = vmatprep.subr.bf16.mxu0 0
        %635 = vmatpush1.bf16.msra.mxu0 0
        %636 = vmatprep.subr.bf16.mxu0 0
        %637 = vmatpush1.bf16.msra.mxu0 0
        %638 = vmatprep.subr.bf16.mxu0 0
        %639 = vmatpush1.bf16.msra.mxu0 0
        %640 = vmatprep.subr.bf16.mxu0 0
        %641 = vmatpush1.bf16.msra.mxu0 0
        %642 = vmatprep.subr.bf16.mxu0 0
        %643 = vmatpush1.bf16.msra.mxu0 0
        %644 = vmatprep.subr.bf16.mxu0 0
        %645 = vmatpush1.bf16.msra.mxu0 0
        %646 = vmatprep.mubr.bf16.mxu0 0
        %647 = vmatmul.mubr.bf16.gmra.mrb[0].mxu0 %v612
        %v648 = vpop.f32.mrb[0].mxu0
        %v649 = vadd.f32 0.0, %v648
        %v650 = vpop.f32.mrb[0].mxu0
        %v651 = vpop.f32.mrb[0].mxu0
        %v652 = vadd.f32 0.0, %v651
        %v653 = vpop.f32.mrb[0].mxu0
        %654 = vdwg.mxu0
        %v655 = vpack.c.bf16 %v652, %v649
        %656 = vmatprep.subr.bf16.mxu0 0
        %657 = vmatpush1.bf16.msra.mxu0 %v655
        %658 = vmatprep.subr.bf16.mxu0 0
        %659 = vmatpush1.bf16.msra.mxu0 0
        %660 = vmatprep.subr.bf16.mxu0 0
        %661 = vmatpush1.bf16.msra.mxu0 0
        %662 = vmatprep.subr.bf16.mxu0 0
        %663 = vmatpush1.bf16.msra.mxu0 0
        %664 = vmatprep.subr.bf16.mxu0 0
        %665 = vmatpush1.bf16.msra.mxu0 0
        %666 = vmatprep.subr.bf16.mxu0 0
        %667 = vmatpush1.bf16.msra.mxu0 0
        %668 = vmatprep.subr.bf16.mxu0 0
        %669 = vmatpush1.bf16.msra.mxu0 0
        %670 = vmatprep.subr.bf16.mxu0 0
        %671 = vmatpush1.bf16.msra.mxu0 0
        %672 = vmatprep.subr.bf16.mxu0 0
        %673 = vmatpush1.bf16.msra.mxu0 0
        %674 = vmatprep.subr.bf16.mxu0 0
        %675 = vmatpush1.bf16.msra.mxu0 0
        %676 = vmatprep.subr.bf16.mxu0 0
        %677 = vmatpush1.bf16.msra.mxu0 0
        %678 = vmatprep.subr.bf16.mxu0 0
        %679 = vmatpush1.bf16.msra.mxu0 0
        %680 = vmatprep.subr.bf16.mxu0 0
        %681 = vmatpush1.bf16.msra.mxu0 0
        %682 = vmatprep.subr.bf16.mxu0 0
        %683 = vmatpush1.bf16.msra.mxu0 0
        %684 = vmatprep.subr.bf16.mxu0 0
        %685 = vmatpush1.bf16.msra.mxu0 0
        %686 = vmatprep.subr.bf16.mxu0 0
        %687 = vmatpush1.bf16.msra.mxu0 0
        %688 = vmatprep.mubr.bf16.mxu0 0
        %689 = vmatmul.mubr.bf16.gmra.mrb[0].mxu0 %v463
        %v690 = vpop.f32.mrb[0].mxu0
        %v691 = vadd.f32 0.0, %v690
        %v692 = vpop.f32.mrb[0].mxu0
        %v693 = vpop.f32.mrb[0].mxu0
        %v694 = vadd.f32 0.0, %v693
        %v695 = vpop.f32.mrb[0].mxu0
        %696 = vdwg.mxu0
        %v697 = vmul.f32 %v691, %v691
        %v698 = vmul.f32 %v694, %v694
        %s699 = scalar_lea.vmem [#allocation7], 32
        %v700 = vld [vmem:[%s699] sm:$0xff]
        %v701 = vld [vmem:[%s699 + $0x8] sm:$0xff]
        %v702 = vmul.f32 %v697, %v700
        %v703 = vmul.f32 %v698, %v701
        %v704 = vadd.f32 %v608, %v702
        %v705 = vadd.f32 %v609, %v703
        %v706 = vadd.f32 %v704, 0.0
        %v707 = vadd.f32 %v706, %v705
        %708 = vst.msk [vmem:[%s348] sm:$0xff] %vm411, %v707
        %s709 = sand.u32 %s180, 1
        %s710 = scalar_lea.sflag [#allocation4], %s709
        %s711 = sand.u32 %s180, 1
        %s712 = smul.addr %s711, 8
        %s713 = scalar_lea.vmem [#allocation10], %s712
        // Predicated region
        $region57: #{tpu_custom_call.1} parent=39 // pred_check
          %p714 = pneg %p190
        $region58: #{tpu_custom_call.1} parent=39 // pred_check_branch
          %716 = sbr.rel (%p714) target = $region60
        $region59: #{tpu_custom_call.1} parent=39 // pred_region
          %s718 = ssub.s32 128, 128
          %719 = vsyncadd %s710, %s718
          %s720 = sadd.s32 %s33, %s32
          %s721 = sadd.s32 %s720, %s31
          %s722 = smul.addr %s721, 128
          %s723 = scalar_lea.hbm %s5, %s722
          %s725 = sshll.u32 %s713, 4
          %s726 = int_to_ptr.vmem [resolvable:$true] %s725
          %728 = dma.vmem_to_hbm [thread:$0]  %s726, 128, %s723, %s710
        $region60: #{tpu_custom_call.1} parent=39 // pred_fallthru
          _
      $region40: #{tpu_custom_call.1} parent=5 // pred_fallthru
        _
      %p729 = scmp.le.s32.totalorder 2, %s21
      // Predicated region
      $region61: #{tpu_custom_call.1} parent=5 // pred_check
        %p730 = pneg %p729
      $region62: #{tpu_custom_call.1} parent=5 // pred_check_branch
        %732 = sbr.rel (%p730) target = $region64
      $region63: #{tpu_custom_call.1} parent=5 // pred_region
        %s733 = ssub.s32 %s21, 2
        // Predicated region
        $region65: #{tpu_custom_call.1} parent=63 // pred_check
          %p734 = pneg %p196
        $region66: #{tpu_custom_call.1} parent=63 // pred_check_branch
          %736 = sbr.rel (%p734) target = $region68
        $region67: #{tpu_custom_call.1} parent=63 // pred_region
          %s737 = sand.u32 %s181, 1
          %s738 = scalar_lea.sflag [#allocation4], %s737
          %s739 = sand.u32 %s181, 1
          %s740 = smul.addr %s739, 8
          %s741 = scalar_lea.vmem [#allocation10], %s740
          %742 = dma.done %s738, 128
        $region68: #{tpu_custom_call.1} parent=63 // pred_fallthru
          _
      $region64: #{tpu_custom_call.1} parent=5 // pred_fallthru
        _
    $region6: #{tpu_custom_call.1} parent=1 // loop_footer
      %s25 = sadd.s32 1, %s21
    $region7: #{tpu_custom_call.1} parent=1 // loop_footer_branch
      %20 = sbr.rel target = $region3
    $region8: #{tpu_custom_call.1} parent=1 // loop_exit
      _
    %743 = vsyncpa [#allocation3], 1
    %s744 = scalar_lea.sflag [#allocation3], 1
    %745 = vsyncpa %s744, 1
    %746 = vsyncpa [#allocation6], 1
    %s747 = scalar_lea.sflag [#allocation6], 1
    %748 = vsyncpa %s747, 1
    %749 = vsyncpa [#allocation9], 1
    %750 = vsyncpa [#allocation4], 1
    %s751 = scalar_lea.sflag [#allocation4], 1
    %752 = vsyncpa %s751, 1

</llo_original>
